<compile_context>
chip_gen: v7x
topology: tpu7x:2x2x1
jax: 0.10.0
libtpu: 0.0.40
codegen_flags: <defaults>
</compile_context>

<pallas_src>
import functools

import jax
import jax.numpy as jnp
import numpy as np
from jax.experimental import pallas as pl
from jax.experimental.pallas import tpu as pltpu

_PI = 3.141592653589793
_SUBLANE = 8                      # f32 sublane multiple (would be 16 for bf16)
_MAX_TB = 1024                    # tiles beyond ~1K rows give <5% extra roofline
_INPUT_VMEM_BUDGET = 16 * 1024 * 1024   # double-buffered input tiles
_FUSE_MIN_ROW_BYTES = 2048        # below this, per-row DMAs are descriptor-bound


def _cdiv(a, b):
    return -(-a // b)


def _round_up(x, m):
    return _cdiv(x, m) * m


def _vmem_limit_bytes():
    """Per-generation scoped-VMEM limit (~60% of physical VMEM)."""
    cap = 64 * 1024 * 1024  # conservative default: v7x per-TensorCore VMEM
    try:
        info = pltpu.get_tpu_info()
        cap = int(getattr(info, "vmem_capacity_bytes", cap))
    except Exception:
        pass
    return max(16 * 1024 * 1024, min(cap * 3 // 5, 96 * 1024 * 1024))


def _pick_tile(batch, row_bytes, input_budget):
    """Rows per batch tile: double-buffered inputs fit the budget, sublane
    aligned, and aiming for >=4 grid tiles so v7x can split across both
    TensorCores and the pipeline always has a step to prefetch."""
    tb = input_budget // max(1, 2 * row_bytes)      # 2 = double buffering
    tb = int(min(tb, _MAX_TB))
    tb = max(_SUBLANE, (tb // _SUBLANE) * _SUBLANE)
    if batch > _SUBLANE:
        tb = min(tb, max(_SUBLANE, _round_up(_cdiv(batch, 4), _SUBLANE)))
    else:
        tb = _SUBLANE
    return tb


def _pad_ids(ids, padded_len):
    ids = ids.astype(jnp.int32)
    b = ids.shape[0]
    if padded_len > b:
        ids = jnp.pad(ids, (0, padded_len - b))   # pads index 0: valid & finite
    return ids


def _logsigmoid(x):
    # numerically stable F.logsigmoid
    return jnp.minimum(x, 0.0) - jnp.log1p(jnp.exp(-jnp.abs(x)))


# ---------------------------------------------------------------------------
# Per-model score functions operating on full-row f32 tiles (TB, D).
# Re/Im splits are static in-kernel views (zero cost when hidden % 128 == 0).
# ---------------------------------------------------------------------------
def _score_transe(gamma, h, r, t):
    return gamma - jnp.sum(jnp.abs(h + r - t), axis=-1, keepdims=True)


def _score_distmult(h, r, t):
    return jnp.sum(h * r * t, axis=-1, keepdims=True)


def _score_complex(h, r, t):
    d = h.shape[-1] // 2
    re_h, im_h = h[:, :d], h[:, d:]
    re_r, im_r = r[:, :d], r[:, d:]
    re_t, im_t = t[:, :d], t[:, d:]
    re_s = re_h * re_r - im_h * im_r
    im_s = re_h * im_r + im_h * re_r
    return jnp.sum(re_s * re_t + im_s * im_t, axis=-1, keepdims=True)


def _score_rotate(gamma, inv_range, h, r, t):
    d = h.shape[-1] // 2
    re_h, im_h = h[:, :d], h[:, d:]
    re_t, im_t = t[:, :d], t[:, d:]
    phase = r * inv_range
    re_r, im_r = jnp.cos(phase), jnp.sin(phase)
    re_s = re_h * re_r - im_h * im_r - re_t
    im_s = re_h * im_r + im_h * re_r - im_t
    return gamma - jnp.sum(jnp.sqrt(re_s * re_s + im_s * im_s),
                           axis=-1, keepdims=True)


def _make_score_fn(model_name, gamma, embedding_range):
    if model_name == "TransE":
        return functools.partial(_score_transe, gamma)
    if model_name == "DistMult":
        return _score_distmult
    if model_name == "ComplEx":
        return _score_complex
    if model_name == "RotatE":
        return functools.partial(_score_rotate, gamma, _PI / embedding_range)
    raise ValueError("model %s not supported" % model_name)


# ---------------------------------------------------------------------------
# Fallback path: XLA gather + batch-tiled BlockSpec pipeline (small rows).
# ---------------------------------------------------------------------------
def _make_tiled_kernel(score_fn):
    def kernel(h_ref, r_ref, t_ref, o_ref):
        h = h_ref[...].astype(jnp.float32)
        r = r_ref[...].astype(jnp.float32)
        t = t_ref[...].astype(jnp.float32)
        o_ref[...] = _logsigmoid(score_fn(h, r, t))
    return kernel


def _kge_blockspec(score_fn, entity_emb, relation_emb, hid, rid, tid,
                   tb, vmem_limit):
    batch = hid.shape[0]
    nt = _cdiv(batch, tb)
    bp = nt * tb
    # Pad only the tiny id vectors (never the gathered (B, D) arrays).
    hid, rid, tid = (_pad_ids(x, bp) for x in (hid, rid, tid))
    head = entity_emb[hid]       # (bp, De)
    rel = relation_emb[rid]      # (bp, Dr)
    tail = entity_emb[tid]       # (bp, De)
    de, dr = head.shape[1], rel.shape[1]

    out = pl.pallas_call(
        _make_tiled_kernel(score_fn),
        out_shape=jax.ShapeDtypeStruct((bp, 1), jnp.float32),
        grid=(nt,),
        in_specs=[pl.BlockSpec((tb, de), lambda i: (i, 0)),
                  pl.BlockSpec((tb, dr), lambda i: (i, 0)),
                  pl.BlockSpec((tb, de), lambda i: (i, 0))],
        out_specs=pl.BlockSpec((tb, 1), lambda i: (i, 0)),
        compiler_params=pltpu.CompilerParams(
            dimension_semantics=("parallel",),
            vmem_limit_bytes=vmem_limit),
    )(head, rel, tail)
    return out[:batch, 0]


# ---------------------------------------------------------------------------
# Fused-gather path: ids in SMEM, tables in HBM, per-row DMAs into
# double-buffered VMEM scratch; next tile prefetched while current computes.
# ---------------------------------------------------------------------------
def _make_fused_kernel(score_fn, tb, tiles_per_split):
    def kernel(hid_ref, rid_ref, tid_ref, ent_ref, rel_ref, o_ref,
               hbuf, rbuf, tbuf, sem):
        split_id = pl.program_id(0)
        local_id = pl.program_id(1)
        tile = split_id * tiles_per_split + local_id
        slot = local_id % 2

        def issue(tile_idx, buf_slot):
            base = tile_idx * tb

            @pl.loop(0, tb)
            def _(j):
                row = base + j
                pltpu.make_async_copy(ent_ref.at[hid_ref[row]],
                                      hbuf.at[buf_slot, j],
                                      sem.at[buf_slot, 0]).start()
                pltpu.make_async_copy(rel_ref.at[rid_ref[row]],
                                      rbuf.at[buf_slot, j],
                                      sem.at[buf_slot, 1]).start()
                pltpu.make_async_copy(ent_ref.at[tid_ref[row]],
                                      tbuf.at[buf_slot, j],
                                      sem.at[buf_slot, 2]).start()

        def wait(tile_idx, buf_slot):
            base = tile_idx * tb

            @pl.loop(0, tb)
            def _(j):
                row = base + j
                pltpu.make_async_copy(ent_ref.at[hid_ref[row]],
                                      hbuf.at[buf_slot, j],
                                      sem.at[buf_slot, 0]).wait()
                pltpu.make_async_copy(rel_ref.at[rid_ref[row]],
                                      rbuf.at[buf_slot, j],
                                      sem.at[buf_slot, 1]).wait()
                pltpu.make_async_copy(ent_ref.at[tid_ref[row]],
                                      tbuf.at[buf_slot, j],
                                      sem.at[buf_slot, 2]).wait()

        # Prologue: first local step on each core primes its own slot 0.
        @pl.when(local_id == 0)
        def _():
            issue(tile, slot)

        # Prefetch next tile's rows into the other slot (overlaps compute).
        @pl.when(local_id + 1 < tiles_per_split)
        def _():
            issue(tile + 1, 1 - slot)

        wait(tile, slot)

        h = hbuf[slot].astype(jnp.float32)
        r = rbuf[slot].astype(jnp.float32)
        t = tbuf[slot].astype(jnp.float32)
        o_ref[...] = _logsigmoid(score_fn(h, r, t))

    return kernel


def _kge_fused(score_fn, entity_emb, relation_emb, hid, rid, tid,
               tb, vmem_limit):
    batch = hid.shape[0]
    nt = _cdiv(batch, tb)
    if nt >= 2:
        nsplit, per = 2, _cdiv(nt, 2)   # leading "parallel" axis -> v7x megacore
    else:
        nsplit, per = 1, 1
    total = nsplit * per
    bp = total * tb
    hid, rid, tid = (_pad_ids(x, bp) for x in (hid, rid, tid))

    de = entity_emb.shape[1]
    dr = relation_emb.shape[1]

    grid_spec = pltpu.PrefetchScalarGridSpec(
        num_scalar_prefetch=3,
        grid=(nsplit, per),
        in_specs=[pl.BlockSpec(memory_space=pl.ANY),     # entity table (HBM)
                  pl.BlockSpec(memory_space=pl.ANY)],    # relation table (HBM)
        out_specs=pl.BlockSpec((tb, 1), lambda s, t, *_: (s * per + t, 0)),
        scratch_shapes=[
            pltpu.VMEM((2, tb, de), entity_emb.dtype),    # head rows
            pltpu.VMEM((2, tb, dr), relation_emb.dtype),  # relation rows
            pltpu.VMEM((2, tb, de), entity_emb.dtype),    # tail rows
            pltpu.SemaphoreType.DMA((2, 3)),
        ])

    out = pl.pallas_call(
        _make_fused_kernel(score_fn, tb, per),
        out_shape=jax.ShapeDtypeStruct((bp, 1), jnp.float32),
        grid_spec=grid_spec,
        compiler_params=pltpu.CompilerParams(
            dimension_semantics=("parallel", "arbitrary"),
            vmem_limit_bytes=vmem_limit),
    )(hid, rid, tid, entity_emb, relation_emb)
    return out[:batch, 0]


# ---------------------------------------------------------------------------
# Public forward: KGEModel.forward(sample=(head_ids, tail_ids), et=rel_ids,
# mode='single') -> logsigmoid(score).squeeze(1), shape (B,).
# ---------------------------------------------------------------------------
def kge_forward(model_name, entity_emb, relation_emb, head_ids, tail_ids,
                rel_ids, gamma, embedding_range):
    score_fn = _make_score_fn(model_name, float(gamma), float(embedding_range))
    de = int(entity_emb.shape[1])
    dr = int(relation_emb.shape[1])
    itemsize = entity_emb.dtype.itemsize
    vmem_limit = _vmem_limit_bytes()
    input_budget = min(_INPUT_VMEM_BUDGET, vmem_limit // 3)
    row_bytes = (2 * de + dr) * itemsize
    tb = _pick_tile(int(head_ids.shape[0]), row_bytes, input_budget)

    if de * itemsize >= _FUSE_MIN_ROW_BYTES:
        return _kge_fused(score_fn, entity_emb, relation_emb,
                          head_ids, rel_ids, tail_ids, tb, vmem_limit)
    # Small rows: per-row DMAs are descriptor-bound; keep the XLA gather.
    return _kge_blockspec(score_fn, entity_emb, relation_emb,
                          head_ids, rel_ids, tail_ids, tb, vmem_limit)


# ---------------------------------------------------------------------------
# Pure-JAX reference mirroring the PyTorch module (verification only).
# ---------------------------------------------------------------------------
def _reference(model_name, entity_emb, relation_emb, head_ids, tail_ids,
               rel_ids, gamma, embedding_range):
    h = entity_emb[head_ids][:, None, :]
    r = relation_emb[rel_ids][:, None, :]
    t = entity_emb[tail_ids][:, None, :]
    if model_name == "TransE":
        s = gamma - jnp.sum(jnp.abs(h + r - t), axis=2)
    elif model_name == "DistMult":
        s = jnp.sum(h * r * t, axis=2)
    elif model_name == "ComplEx":
        re_h, im_h = jnp.split(h, 2, axis=2)
        re_r, im_r = jnp.split(r, 2, axis=2)
        re_t, im_t = jnp.split(t, 2, axis=2)
        re_s = re_h * re_r - im_h * im_r
        im_s = re_h * im_r + im_h * re_r
        s = jnp.sum(re_s * re_t + im_s * im_t, axis=2)
    else:  # RotatE
        re_h, im_h = jnp.split(h, 2, axis=2)
        re_t, im_t = jnp.split(t, 2, axis=2)
        phase = r / (embedding_range / _PI)
        re_r, im_r = jnp.cos(phase), jnp.sin(phase)
        re_s = re_h * re_r - im_h * im_r - re_t
        im_s = re_h * im_r + im_h * re_r - im_t
        s = gamma - jnp.sum(jnp.sqrt(re_s**2 + im_s**2), axis=2)
    return jax.nn.log_sigmoid(s)[:, 0]


def build_params(model_name, nentity, nrelation, hidden_dim, gamma, key):
    """Deterministic parameter init mirroring KGEModel.__init__ (uniform)."""
    epsilon = 2.0
    embedding_range = (gamma + epsilon) / hidden_dim
    double_entity = model_name in ("RotatE", "ComplEx")
    double_relation = model_name == "ComplEx"
    entity_dim = hidden_dim * 2 if double_entity else hidden_dim
    relation_dim = hidden_dim * 2 if double_relation else hidden_dim
    k1, k2 = jax.random.split(key)
    entity_emb = jax.random.uniform(
        k1, (nentity, entity_dim), jnp.float32,
        minval=-embedding_range, maxval=embedding_range)
    relation_emb = jax.random.uniform(
        k2, (nrelation, relation_dim), jnp.float32,
        minval=-embedding_range, maxval=embedding_range)
    return entity_emb, relation_emb, embedding_range


if __name__ == "__main__":
    key = jax.random.PRNGKey(0)
    kp, kh, kt, kr = jax.random.split(key, 4)
    nentity, nrelation, gamma = 64, 16, 12.0

    configs = [
        dict(hidden_dim=128, batch=8),    # small rows -> XLA gather + BlockSpec
        dict(hidden_dim=512, batch=40),   # big rows   -> fused in-kernel gather
    ]

    ok = True
    for cfg in configs:
        hidden_dim, B = cfg["hidden_dim"], cfg["batch"]
        head_ids = jax.random.randint(kh, (B,), 0, nentity, dtype=jnp.int32)
        tail_ids = jax.random.randint(kt, (B,), 0, nentity, dtype=jnp.int32)
        rel_ids = jax.random.randint(kr, (B,), 0, nrelation, dtype=jnp.int32)
        for model_name in ("TransE", "DistMult", "ComplEx", "RotatE"):
            entity_emb, relation_emb, emb_range = build_params(
                model_name, nentity, nrelation, hidden_dim, gamma, kp)
            out = kge_forward(model_name, entity_emb, relation_emb,
                              head_ids, tail_ids, rel_ids, gamma, emb_range)
            out = jax.block_until_ready(out)
            ref = _reference(model_name, entity_emb, relation_emb,
                             head_ids, tail_ids, rel_ids, gamma, emb_range)
            ref = jax.block_until_ready(ref)
            if out.shape != (B,) or not np.allclose(np.asarray(out),
                                                    np.asarray(ref),
                                                    rtol=1e-4, atol=1e-4):
                ok = False
                print(f"MISMATCH {model_name} hidden={hidden_dim} B={B}")

    if ok:
        print("KERNEL_OK")
</pallas_src>

<mosaic_0001>
module attributes {stable_mosaic.version = 11 : i64} {
  func.func @kernel(%arg0: i32, %arg1: memref<8x128xf32, #tpu.memory_space<vmem>>, %arg2: memref<8x128xf32, #tpu.memory_space<vmem>>, %arg3: memref<8x128xf32, #tpu.memory_space<vmem>>, %arg4: memref<8x1xf32, #tpu.memory_space<vmem>>) attributes {dimension_semantics = [#tpu.dimension_semantics<parallel>], iteration_bounds = array<i64: 1>, scalar_prefetch = 0 : i64, scratch_operands = 0 : i64, tpu.core_type = #tpu.core_type<tc>, window_params = [{transform_indices = @transform_0, window_bounds = array<i64: 8, 128>}, {transform_indices = @transform_1, window_bounds = array<i64: 8, 128>}, {transform_indices = @transform_2, window_bounds = array<i64: 8, 128>}, {transform_indices = @transform_3, window_bounds = array<i64: 8, 1>}]} {
    %c0 = arith.constant 0 : index
    %c0_0 = arith.constant 0 : index
    %0 = vector.load %arg1[%c0, %c0_0] : memref<8x128xf32, #tpu.memory_space<vmem>>, vector<8x128xf32>
    %c0_1 = arith.constant 0 : index
    %c0_2 = arith.constant 0 : index
    %1 = vector.load %arg2[%c0_1, %c0_2] : memref<8x128xf32, #tpu.memory_space<vmem>>, vector<8x128xf32>
    %c0_3 = arith.constant 0 : index
    %c0_4 = arith.constant 0 : index
    %2 = vector.load %arg3[%c0_3, %c0_4] : memref<8x128xf32, #tpu.memory_space<vmem>>, vector<8x128xf32>
    %3 = arith.addf %0, %1 : vector<8x128xf32>
    %4 = arith.subf %3, %2 : vector<8x128xf32>
    %5 = math.absf %4 : vector<8x128xf32>
    %cst = arith.constant dense<0.000000e+00> : vector<8xf32>
    %6 = vector.multi_reduction <add>, %5, %cst [1] : vector<8x128xf32> to vector<8xf32>
    %7 = vector.shape_cast %6 : vector<8xf32> to vector<8x1xf32>
    %cst_5 = arith.constant 1.200000e+01 : f32
    %8 = vector.broadcast %cst_5 : f32 to vector<8x1xf32>
    %9 = arith.subf %8, %7 : vector<8x1xf32>
    %cst_6 = arith.constant 0.000000e+00 : f32
    %10 = vector.broadcast %cst_6 : f32 to vector<8x1xf32>
    %11 = arith.minimumf %9, %10 : vector<8x1xf32>
    %12 = math.absf %9 : vector<8x1xf32>
    %cst_7 = arith.constant 0.000000e+00 : f32
    %13 = vector.broadcast %cst_7 : f32 to vector<8x1xf32>
    %14 = arith.subf %13, %12 : vector<8x1xf32>
    %15 = math.exp %14 : vector<8x1xf32>
    %16 = math.log1p %15 : vector<8x1xf32>
    %17 = arith.subf %11, %16 : vector<8x1xf32>
    %c0_8 = arith.constant 0 : index
    %c0_9 = arith.constant 0 : index
    %18 = vector.load %arg4[%c0_8, %c0_9] : memref<8x1xf32, #tpu.memory_space<vmem>>, vector<8x1xf32>
    tpu.vector_store %arg4[%c0_8, %c0_9], %17 {strides = array<i32>} : memref<8x1xf32, #tpu.memory_space<vmem>>, vector<8x1xf32>,
    return
  }
  func.func @transform_0(%arg0: i32) -> (i32, i32) {
    %c0_i32 = arith.constant 0 : i32
    %c0_i32_0 = arith.constant 0 : i32
    return %arg0, %c0_i32 : i32, i32
  }
  func.func @transform_1(%arg0: i32) -> (i32, i32) {
    %c0_i32 = arith.constant 0 : i32
    %c0_i32_0 = arith.constant 0 : i32
    return %arg0, %c0_i32 : i32, i32
  }
  func.func @transform_2(%arg0: i32) -> (i32, i32) {
    %c0_i32 = arith.constant 0 : i32
    %c0_i32_0 = arith.constant 0 : i32
    return %arg0, %c0_i32 : i32, i32
  }
  func.func @transform_3(%arg0: i32) -> (i32, i32) {
    %c0_i32 = arith.constant 0 : i32
    %c0_i32_0 = arith.constant 0 : i32
    return %arg0, %c0_i32 : i32, i32
  }
}

</mosaic_0001>

<llo_original>
// kernel: tpu_custom_call.1
$region0: #{tpu_custom_call.1}
  #allocation0 [shape = 'u32[]', space=smem, size = 0x4, offset = 0x4, fixed_abs, tag = 'smem constant byte address 0x4 - core index']
  #allocation1 [shape = 'u32[144,128]{1,0:T(1,128)}', space=vmem, size = 0x12000, scoped, tag = 'internal scratch']
  %s0 = inlined_call_operand.hbm [shape: f32[8,128], index: 0, kind: input, shape index: {}]
  %s1 = inlined_call_operand.hbm [shape: f32[8,128], index: 1, kind: input, shape index: {}]
  %s2 = inlined_call_operand.hbm [shape: f32[8,128], index: 2, kind: input, shape index: {}]
  %s3 = inlined_call_operand.vmem [shape: f32[8,1], index: 3, kind: output, shape index: {}]
  %s4 = sld [smem:[#allocation0]]
  $region34: #{tpu_custom_call.1} parent=0
    _
  %s6 = ssub.s32 1, %s4
  %s7 = scalar_select 0, %s6, %s4
  $region1: #{tpu_custom_call.1} parent=0
    #allocation2 [shape = 'u8[4096]{0}', space=vmem, size = 0x1000, scoped, tag = 'input window, operand 0, single buffered']
    #allocation3 [shape = 's32[1]{0}', space=sflag, size = 0x4, scoped, tag = 'scoped memory for tpu_custom_call.1']
    #allocation4 [shape = 'u8[4096]{0}', space=vmem, size = 0x1000, scoped, tag = 'input window, operand 1, single buffered']
    #allocation5 [shape = 's32[1]{0}', space=sflag, size = 0x4, scoped, tag = 'scoped memory for tpu_custom_call.1']
    #allocation6 [shape = 'u8[4096]{0}', space=vmem, size = 0x1000, scoped, tag = 'input window, operand 2, single buffered']
    %8 = vsyncpa [#allocation3], 0
    %9 = vsyncpa [#allocation5], 0
    // Predicated region
    $region2: #{tpu_custom_call.1} parent=1 // pred_check
      _
    $region3: #{tpu_custom_call.1} parent=1 // pred_check_branch
      %11 = sbr.rel (0) target = $region5
    $region4: #{tpu_custom_call.1} parent=1 // pred_region
      %s13 = ssub.s32 128, 128
      %14 = vsyncadd [#allocation3], %s13
      %s16 = sshll.u32 [#allocation2], 4
      %s17 = int_to_ptr.vmem [resolvable:$true] %s16
      %19 = dma.hbm_to_vmem [thread:$0]  %s0, 128, %s17, [#allocation3]
    $region5: #{tpu_custom_call.1} parent=1 // pred_fallthru
      _
    // Predicated region
    $region6: #{tpu_custom_call.1} parent=1 // pred_check
      _
    $region7: #{tpu_custom_call.1} parent=1 // pred_check_branch
      %21 = sbr.rel (0) target = $region9
    $region8: #{tpu_custom_call.1} parent=1 // pred_region
      %s23 = ssub.s32 128, 128
      %24 = vsyncadd [#allocation5], %s23
      %s26 = sshll.u32 [#allocation4], 4
      %s27 = int_to_ptr.vmem [resolvable:$true] %s26
      %29 = dma.hbm_to_vmem [thread:$0]  %s1, 128, %s27, [#allocation5]
    $region9: #{tpu_custom_call.1} parent=1 // pred_fallthru
      _
    // Predicated region
    $region10: #{tpu_custom_call.1} parent=1 // pred_check
      _
    $region11: #{tpu_custom_call.1} parent=1 // pred_check_branch
      %31 = sbr.rel (0) target = $region13
    $region12: #{tpu_custom_call.1} parent=1 // pred_region
      %s33 = ssub.s32 128, 128
      %34 = vsyncadd [#allocation5], %s33
      %s36 = sshll.u32 [#allocation6], 4
      %s37 = int_to_ptr.vmem [resolvable:$true] %s36
      %39 = dma.hbm_to_vmem [thread:$0]  %s2, 128, %s37, [#allocation5]
    $region13: #{tpu_custom_call.1} parent=1 // pred_fallthru
      _
    // Predicated region
    $region14: #{tpu_custom_call.1} parent=1 // pred_check
      _
    $region15: #{tpu_custom_call.1} parent=1 // pred_check_branch
      %41 = sbr.rel (0) target = $region17
    $region16: #{tpu_custom_call.1} parent=1 // pred_region
      %42 = dma.done [#allocation3], 128
    $region17: #{tpu_custom_call.1} parent=1 // pred_fallthru
      _
    // Predicated region
    $region18: #{tpu_custom_call.1} parent=1 // pred_check
      _
    $region19: #{tpu_custom_call.1} parent=1 // pred_check_branch
      %44 = sbr.rel (0) target = $region21
    $region20: #{tpu_custom_call.1} parent=1 // pred_region
      %45 = dma.done [#allocation5], 128
    $region21: #{tpu_custom_call.1} parent=1 // pred_fallthru
      _
    // Predicated region
    $region22: #{tpu_custom_call.1} parent=1 // pred_check
      _
    $region23: #{tpu_custom_call.1} parent=1 // pred_check_branch
      %47 = sbr.rel (0) target = $region25
    $region24: #{tpu_custom_call.1} parent=1 // pred_region
      %48 = dma.done [#allocation5], 128
    $region25: #{tpu_custom_call.1} parent=1 // pred_fallthru
      _
    %v49 = vld [vmem:[#allocation2] sm:$0xff]
    %v50 = vld [vmem:[#allocation4] sm:$0xff]
    %v51 = vld [vmem:[#allocation6] sm:$0xff]
    %v52 = vadd.f32 %v49, %v50
    %v53 = vsub.f32 %v52, %v51
    %v54 = vand.u32 2147483647, %v53
    %55 = vadd.xlane.f32.xlu0 %v54
    %v56 = vpop.xlane.xlu0 %55
    %v57 = vsub.f32 12.0, %v56
    %v58 = vmin.f32 %v57, 0.0
    %v59 = vand.u32 2147483647, %v57
    %v60 = vsub.f32 0.0, %v59
    %v61 = vmul.f32 %v60, 1.442695
    %v62 = vpow.pop %v61
    %v63 = vadd.f32 %v62, 1.0
    %v64 = vlog2.pop %v63
    %v65 = vmul.f32 %v64, 0.6931472
    %v66 = vmul.f32 -0.5, %v62
    %v67 = vadd.f32 %v66, 1.0
    %v68 = vmul.f32 %v67, %v62
    %v69 = vand.u32 2147483647, %v62
    %vm70 = vcmp.lt.f32.partialorder %v69, 0.0004427343
    %v71 = vsel %vm70, %v68, %v65
    %v72 = vsub.f32 %v58, %v71
    %vm73 = vcmask 7168
    %74 = vst.msk [vmem:[%s3] sm:$0xff] %vm73, %v72
    // Predicated region
    $region26: #{tpu_custom_call.1} parent=1 // pred_check
      _
    $region27: #{tpu_custom_call.1} parent=1 // pred_check_branch
      %76 = sbr.rel (0) target = $region29
    $region28: #{tpu_custom_call.1} parent=1 // pred_region
      _
    $region29: #{tpu_custom_call.1} parent=1 // pred_fallthru
      _
    // Predicated region
    $region30: #{tpu_custom_call.1} parent=1 // pred_check
      _
    $region31: #{tpu_custom_call.1} parent=1 // pred_check_branch
      %78 = sbr.rel (0) target = $region33
    $region32: #{tpu_custom_call.1} parent=1 // pred_region
      _
    $region33: #{tpu_custom_call.1} parent=1 // pred_fallthru
      _
    %79 = vsyncpa [#allocation3], 1
    %80 = vsyncpa [#allocation5], 1

</llo_original>
